<compile_context>
chip_gen: v5e
topology: v5e:2x2
jax: 0.10.0
libtpu: 0.0.40
codegen_flags: <defaults>
</compile_context>

<pallas_src>
import numpy as np

import jax
import jax.numpy as jnp
from jax.experimental import pallas as pl
from jax.experimental.pallas import tpu as pltpu

# Deterministic "parameter" from the module's __init__ (shape [1, 30]).
# Kept as a host-side NumPy constant (no device init on import).
_PREDICTION_NP = np.array(
    [[0.4685, -0.2319, -0.4253, -0.1953, 0.2908, -0.2214, 0.5992, -0.2214,
      -0.2685, -0.2109, -0.5873, -0.19, 0.1967, -0.3827, 0.7656, -0.4295,
      -0.2035, -0.3758, -0.7389, -0.3573, 0.0086, 0.2333, 0.4163, 0.662,
      -0.3521, 0.6985, 0.0138, 0.6045, 0.019, 0.9076]],
    dtype=np.float32,
)

_K = 30                                   # keypoint coords per sample
_ROWS_PER_SLAB_ROW = 64                   # 64 * 30 = 1920 = lcm(30, 128)
_LANES = _K * _ROWS_PER_SLAB_ROW          # 1920 lanes: lane-dense last dim

# Lane-dense (1, 1920) pattern = 64 copies of the prediction row.  Because the
# output slab is read back as (N_pad, 30), every 30-lane group in this pattern
# is one full, exact prediction row.
_PATTERN_NP = np.tile(_PREDICTION_NP, (1, _ROWS_PER_SLAB_ROW))   # (1, 1920)

# Max slab rows per grid step on the tiled path:
#   512 rows * 1920 lanes * 4 B = 3.75 MiB useful per step (no lane padding),
#   double-buffered 7.5 MiB -> safe under v5e's 16 MiB scoped-VMEM default and
#   large enough to hide the ~0.35 us per-step overhead on v5e/v6e/v7x.
_MAX_BLOCK_SLAB_ROWS = 512

# Up to this many batch rows (= 32 slab rows, 240 KB output) use a single
# gridless block: the whole job is launch-overhead dominated anyway.
_GRIDLESS_MAX_BATCH = 2048


def _broadcast_kernel(pat_ref, out_ref):
    # pat_ref: (1, 1920) VMEM tile holding the lane-dense constant pattern.
    # out_ref: (rows, 1920) VMEM tile; replicate the pattern down the sublanes.
    # One VPU sublane-replicate per vreg column -> kernel is purely
    # store/writeback bound, and every vst is a full-lane unmasked store.
    out_ref[...] = jnp.broadcast_to(pat_ref[...], out_ref.shape)


def dummy_keypoint_model(x: jax.Array) -> jax.Array:
    """Forward pass: constant prediction repeated over the batch of `x`.

    x: (N, C, H, W) array (only its batch size is used, as in PyTorch).
    returns: (N, 1, 1, 30) float32 array.
    """
    n = x.shape[0]

    if n == 0:  # degenerate batch: avoid a zero-size grid/block
        return jnp.zeros((0, 1, 1, _K), jnp.float32)

    # Lane-dense slab geometry: each slab row packs 64 batch rows (1920 lanes).
    slab_rows = pl.cdiv(n, _ROWS_PER_SLAB_ROW)
    n_pad = slab_rows * _ROWS_PER_SLAB_ROW

    pattern = jnp.asarray(_PATTERN_NP)    # (1, 1920), 7.7 KB

    if n <= _GRIDLESS_MAX_BATCH:
        # Small batch: single whole-slab block, no grid loop, no pipeline
        # bookkeeping, one dense writeback.
        out_slab = pl.pallas_call(
            _broadcast_kernel,
            out_shape=jax.ShapeDtypeStruct((slab_rows, _LANES), jnp.float32),
        )(pattern)
    else:
        # Large batch: tile the slab-row axis.  Block rows are a multiple of 8,
        # capped at _MAX_BLOCK_SLAB_ROWS, and <= ~half the slab so the grid
        # always has >= 2 steps (writeback/compute overlap; both v7x TCs used).
        half = pl.cdiv(slab_rows, 2)
        block_rows = min(_MAX_BLOCK_SLAB_ROWS, 8 * pl.cdiv(half, 8))
        grid = (pl.cdiv(slab_rows, block_rows),)

        out_slab = pl.pallas_call(
            _broadcast_kernel,
            out_shape=jax.ShapeDtypeStruct((slab_rows, _LANES), jnp.float32),
            grid=grid,
            in_specs=[pl.BlockSpec((1, _LANES), lambda i: (0, 0))],
            out_specs=pl.BlockSpec((block_rows, _LANES), lambda i: (i, 0)),
            compiler_params=pltpu.CompilerParams(
                dimension_semantics=("parallel",)),
        )(pattern)

    # Glue back to the module's contract.  (slab_rows, 1920) -> (n_pad, 30) is
    # memory-order preserving (free metadata reshape); the prefix slice only
    # happens when N is not a multiple of 64 and drops rows that already hold
    # exact prediction values.
    out = out_slab.reshape(n_pad, _K)
    if n_pad != n:
        out = out[:n]
    return out.reshape(n, 1, 1, _K)


if __name__ == "__main__":
    key = jax.random.PRNGKey(0)
    # Small shapes consistent with an image-keypoint model input (NCHW).
    x = jax.random.normal(key, (2, 4, 16, 16), dtype=jnp.float32)

    out = dummy_keypoint_model(x)
    jax.block_until_ready(out)

    # Sanity checks against the PyTorch reference semantics (gridless path).
    assert out.shape == (2, 1, 1, 30), out.shape
    expected = jnp.broadcast_to(
        jnp.asarray(_PREDICTION_NP).reshape(1, 1, 1, _K), (2, 1, 1, _K))
    assert jnp.allclose(out, expected), "output mismatch (small batch)"

    # Also exercise the tiled path + the non-multiple-of-64 tail handling.
    n_big = 2056  # > _GRIDLESS_MAX_BATCH, and 2056 % 64 != 0
    x_big = jnp.zeros((n_big, 1, 1, 1), dtype=jnp.float32)
    out_big = dummy_keypoint_model(x_big)
    jax.block_until_ready(out_big)
    assert out_big.shape == (n_big, 1, 1, 30), out_big.shape
    expected_big = jnp.broadcast_to(
        jnp.asarray(_PREDICTION_NP).reshape(1, 1, 1, _K), (n_big, 1, 1, _K))
    assert jnp.allclose(out_big, expected_big), "output mismatch (tiled path)"

    print("KERNEL_OK")
</pallas_src>

<mosaic_0001>
module attributes {stable_mosaic.version = 11 : i64} {
  func.func @_broadcast_kernel(%arg0: memref<1x1920xf32, #tpu.memory_space<vmem>>, %arg1: memref<1x1920xf32, #tpu.memory_space<vmem>>) attributes {dimension_semantics = [], scalar_prefetch = 0 : i64, scratch_operands = 0 : i64, tpu.core_type = #tpu.core_type<tc>} {
    %c0 = arith.constant 0 : index
    %c0_0 = arith.constant 0 : index
    %0 = vector.load %arg0[%c0, %c0_0] : memref<1x1920xf32, #tpu.memory_space<vmem>>, vector<1x1920xf32>
    %c0_1 = arith.constant 0 : index
    %c0_2 = arith.constant 0 : index
    %1 = vector.load %arg1[%c0_1, %c0_2] : memref<1x1920xf32, #tpu.memory_space<vmem>>, vector<1x1920xf32>
    tpu.vector_store %arg1[%c0_1, %c0_2], %0 {strides = array<i32>} : memref<1x1920xf32, #tpu.memory_space<vmem>>, vector<1x1920xf32>,
    return
  }
}

</mosaic_0001>

<llo_original>
// kernel: tpu_custom_call.1
$region0: #{tpu_custom_call.1}
  #allocation0 [shape = 'u32[]', space=smem, size = 0x4, offset = 0x4, fixed_abs, tag = 'smem constant byte address 0x4 - core index']
  #allocation1 [shape = 'u32[72,128]{1,0:T(1,128)}', space=vmem, size = 0x9000, scoped, tag = 'internal scratch']
  %s0 = inlined_call_operand.hbm [shape: f32[1,1920], index: 0, kind: input, shape index: {}]
  %s1 = inlined_call_operand.hbm [shape: f32[1,1920], index: 1, kind: output, shape index: {}]
  %s2 = sld [smem:[#allocation0]]
  $region18: #{tpu_custom_call.1} parent=0
    _
  %s4 = ssub.s32 1, %s2
  %s5 = scalar_select 0, %s4, %s2
  $region1: #{tpu_custom_call.1} parent=0
    #allocation2 [shape = 'u8[7680]{0}', space=vmem, size = 0x2000, scoped, tag = 'input window, operand 0, single buffered']
    #allocation3 [shape = 's32[1]{0}', space=sflag, size = 0x4, scoped, tag = 'scoped memory for tpu_custom_call.1']
    #allocation4 [shape = 's32[1]{0}', space=sflag, size = 0x4, scoped, tag = 'scoped memory for tpu_custom_call.1']
    #allocation5 [shape = 'u8[7680]{0}', space=vmem, size = 0x2000, scoped, tag = 'output window, operand 0, single buffered']
    %6 = vsyncpa [#allocation3], 0
    %7 = vsyncpa [#allocation4], 0
    // Predicated region
    $region2: #{tpu_custom_call.1} parent=1 // pred_check
      _
    $region3: #{tpu_custom_call.1} parent=1 // pred_check_branch
      %9 = sbr.rel (0) target = $region5
    $region4: #{tpu_custom_call.1} parent=1 // pred_region
      %11 = vsyncadd [#allocation3], 0
      %s13 = sshll.u32 %s0, 4
      %s14 = int_to_ptr.hbm [resolvable:$true] %s13
      %s15 = sshll.u32 [#allocation2], 4
      %s16 = int_to_ptr.vmem [resolvable:$true] %s15
      %18 = dma.hbm_to_vmem [thread:$0]  %s14, 240, %s16, [#allocation3]
    $region5: #{tpu_custom_call.1} parent=1 // pred_fallthru
      _
    // Predicated region
    $region6: #{tpu_custom_call.1} parent=1 // pred_check
      _
    $region7: #{tpu_custom_call.1} parent=1 // pred_check_branch
      %20 = sbr.rel (0) target = $region9
    $region8: #{tpu_custom_call.1} parent=1 // pred_region
      %22 = dma.done [#allocation3], 240
    $region9: #{tpu_custom_call.1} parent=1 // pred_fallthru
      _
    %v23 = vld [vmem:[#allocation2] sm:$0xff]
    %v24 = vld [vmem:[#allocation2 + $0x8] sm:$0xff]
    %25 = vst [vmem:[#allocation5] sm:$0xff] %v23
    %v26 = vlaneseq
    %vm27 = vcmp.ge.s32.totalorder %v26, 0
    %vm28 = vcmp.lt.s32.totalorder %v26, 896
    %vm29 = vmand %vm27, %vm28
    %30 = vst.msk [vmem:[#allocation5 + $0x8] sm:$0x7f] %vm29, %v24
    // Predicated region
    $region10: #{tpu_custom_call.1} parent=1 // pred_check
      _
    $region11: #{tpu_custom_call.1} parent=1 // pred_check_branch
      %32 = sbr.rel (0) target = $region13
    $region12: #{tpu_custom_call.1} parent=1 // pred_region
      %34 = vsyncadd [#allocation4], 0
      %s36 = sshll.u32 [#allocation5], 4
      %s37 = int_to_ptr.vmem [resolvable:$true] %s36
      %s38 = sshll.u32 %s1, 4
      %s39 = int_to_ptr.hbm [resolvable:$true] %s38
      %41 = dma.vmem_to_hbm [thread:$0]  %s37, 240, %s39, [#allocation4]
    $region13: #{tpu_custom_call.1} parent=1 // pred_fallthru
      _
    // Predicated region
    $region14: #{tpu_custom_call.1} parent=1 // pred_check
      _
    $region15: #{tpu_custom_call.1} parent=1 // pred_check_branch
      %43 = sbr.rel (0) target = $region17
    $region16: #{tpu_custom_call.1} parent=1 // pred_region
      %45 = dma.done [#allocation4], 240
    $region17: #{tpu_custom_call.1} parent=1 // pred_fallthru
      _
    %46 = vsyncpa [#allocation3], 1
    %47 = vsyncpa [#allocation4], 1

</llo_original>
